<compile_context>
chip_gen: v7x
topology: tpu7x:2x2x1
jax: 0.10.0
libtpu: 0.0.40
codegen_flags: <defaults>
</compile_context>

<pallas_src>
import jax
import jax.numpy as jnp
from jax import lax
from jax.experimental import pallas as pl
from jax.experimental.pallas import tpu as pltpu

EPS = 1e-5

# Keep double-buffered x + out tiles comfortably inside the scoped VMEM limit
# (v7x physical VMEM is only 64 MiB, so budget ~24 MiB of pipelined buffers).
_VMEM_TILE_BUDGET_BYTES = 24 << 20
_VMEM_LIMIT_BYTES = 48 << 20


def _batchnorm1d_kernel(x_ref, w_ref, b_ref, o_ref):
    x = x_ref[...].astype(jnp.float32)                             # (N, TILE_C)
    n = x.shape[0]
    mean = jnp.sum(x, axis=0, keepdims=True) * (1.0 / n)           # (1, TILE_C)
    diff = x - mean
    var = jnp.sum(diff * diff, axis=0, keepdims=True) * (1.0 / n)  # biased var
    scale = lax.rsqrt(var + EPS) * w_ref[...]                      # (1, TILE_C)
    shift = b_ref[...] - mean * scale                              # (1, TILE_C)
    o_ref[...] = (x * scale + shift).astype(o_ref.dtype)           # fused FMA


def _choose_tile_c(n, c, itemsize):
    """Largest multiple-of-128 channel tile that fits the VMEM budget."""
    if c % 128 != 0:
        # Small / unaligned C: use the full extent as a single block
        # (legal because block_shape equals the full array dims).
        return c
    # 2 double-buffered tiles (input + output) of shape (N, TILE_C).
    max_tile = _VMEM_TILE_BUDGET_BYTES // max(1, 4 * n * itemsize)
    max_tile = max(128, (max_tile // 128) * 128)
    tile = min(c, max_tile)
    # Make the tile divide C exactly (C is a multiple of 128 here).
    while c % tile != 0:
        tile -= 128
    return tile


def norm_layer_net(x, weight, bias):
    """Forward of NormLayerNet: BatchNorm1d(input_size), weight=1, bias=0."""
    orig_shape = x.shape
    x2 = x[None, :] if x.ndim == 1 else x
    N, C = x2.shape
    itemsize = jnp.dtype(x2.dtype).itemsize

    w2 = weight.reshape(1, C).astype(jnp.float32)
    b2 = bias.reshape(1, C).astype(jnp.float32)

    tile_c = _choose_tile_c(N, C, itemsize)
    grid = (pl.cdiv(C, tile_c),)

    cost = pl.CostEstimate(
        flops=8 * N * C,
        transcendentals=C,
        bytes_accessed=2 * N * C * itemsize + 2 * C * 4,
    )

    out = pl.pallas_call(
        _batchnorm1d_kernel,
        out_shape=jax.ShapeDtypeStruct((N, C), x2.dtype),
        grid_spec=pl.GridSpec(
            grid=grid,
            in_specs=[
                pl.BlockSpec((N, tile_c), lambda j: (0, j)),
                pl.BlockSpec((1, tile_c), lambda j: (0, j)),
                pl.BlockSpec((1, tile_c), lambda j: (0, j)),
            ],
            out_specs=pl.BlockSpec((N, tile_c), lambda j: (0, j)),
        ),
        compiler_params=pltpu.CompilerParams(
            dimension_semantics=("parallel",),
            vmem_limit_bytes=_VMEM_LIMIT_BYTES,
        ),
        cost_estimate=cost,
    )(x2, w2, b2)

    return out.reshape(orig_shape)


def _reference(x):
    orig_shape = x.shape
    x2 = x[None, :] if x.ndim == 1 else x
    mean = jnp.mean(x2, axis=0, keepdims=True)
    var = jnp.mean((x2 - mean) ** 2, axis=0, keepdims=True)
    y = (x2 - mean) / jnp.sqrt(var + EPS)
    return y.reshape(orig_shape)


if __name__ == "__main__":
    key = jax.random.PRNGKey(0)

    # Case 1: the module's natural small shape (batch, input_size).
    batch, input_size = 8, 32
    x_small = jax.random.normal(key, (batch, input_size), dtype=jnp.float32)
    w_small = jnp.ones((input_size,), dtype=jnp.float32)
    b_small = jnp.zeros((input_size,), dtype=jnp.float32)
    out_small = jax.block_until_ready(norm_layer_net(x_small, w_small, b_small))
    assert out_small.shape == x_small.shape
    assert jnp.allclose(out_small, _reference(x_small), atol=1e-5, rtol=1e-5)

    # Case 2: lane-dense channel count that exercises the tiled/parallel path.
    k2 = jax.random.PRNGKey(1)
    batch2, c2 = 16, 256
    x_big = jax.random.normal(k2, (batch2, c2), dtype=jnp.float32)
    w_big = jnp.ones((c2,), dtype=jnp.float32)
    b_big = jnp.zeros((c2,), dtype=jnp.float32)
    out_big = jax.block_until_ready(norm_layer_net(x_big, w_big, b_big))
    assert out_big.shape == x_big.shape
    assert jnp.allclose(out_big, _reference(x_big), atol=1e-5, rtol=1e-5)

    # Case 3: 1-D input path (unsqueeze / reshape-back semantics).
    x_1d = jax.random.normal(jax.random.PRNGKey(2), (input_size,), dtype=jnp.float32)
    out_1d = jax.block_until_ready(norm_layer_net(x_1d, w_small, b_small))
    assert out_1d.shape == x_1d.shape
    assert jnp.allclose(out_1d, _reference(x_1d), atol=1e-5, rtol=1e-5)

    print("KERNEL_OK")
</pallas_src>

<mosaic_0001>
module attributes {stable_mosaic.version = 11 : i64} {
  func.func @_batchnorm1d_kernel(%arg0: i32, %arg1: memref<8x32xf32, #tpu.memory_space<vmem>>, %arg2: memref<1x32xf32, #tpu.memory_space<vmem>>, %arg3: memref<1x32xf32, #tpu.memory_space<vmem>>, %arg4: memref<8x32xf32, #tpu.memory_space<vmem>>) attributes {dimension_semantics = [#tpu.dimension_semantics<parallel>], iteration_bounds = array<i64: 1>, scalar_prefetch = 0 : i64, scratch_operands = 0 : i64, tpu.core_type = #tpu.core_type<tc>, window_params = [{transform_indices = @transform_0, window_bounds = array<i64: 8, 32>}, {transform_indices = @transform_1, window_bounds = array<i64: 1, 32>}, {transform_indices = @transform_2, window_bounds = array<i64: 1, 32>}, {transform_indices = @transform_3, window_bounds = array<i64: 8, 32>}]} {
    %c0 = arith.constant 0 : index
    %c0_0 = arith.constant 0 : index
    %0 = vector.load %arg1[%c0, %c0_0] : memref<8x32xf32, #tpu.memory_space<vmem>>, vector<8x32xf32>
    %cst = arith.constant dense<0.000000e+00> : vector<32xf32>
    %1 = vector.multi_reduction <add>, %0, %cst [0] : vector<8x32xf32> to vector<32xf32>
    %2 = vector.shape_cast %1 : vector<32xf32> to vector<1x32xf32>
    %cst_1 = arith.constant 1.250000e-01 : f32
    %3 = vector.broadcast %cst_1 : f32 to vector<1x32xf32>
    %4 = arith.mulf %2, %3 : vector<1x32xf32>
    %5 = vector.broadcast %4 : vector<1x32xf32> to vector<8x32xf32>
    %6 = arith.subf %0, %5 : vector<8x32xf32>
    %7 = arith.mulf %6, %6 : vector<8x32xf32>
    %cst_2 = arith.constant dense<0.000000e+00> : vector<32xf32>
    %8 = vector.multi_reduction <add>, %7, %cst_2 [0] : vector<8x32xf32> to vector<32xf32>
    %9 = vector.shape_cast %8 : vector<32xf32> to vector<1x32xf32>
    %cst_3 = arith.constant 1.250000e-01 : f32
    %10 = vector.broadcast %cst_3 : f32 to vector<1x32xf32>
    %11 = arith.mulf %9, %10 : vector<1x32xf32>
    %cst_4 = arith.constant 9.99999974E-6 : f32
    %12 = vector.broadcast %cst_4 : f32 to vector<1x32xf32>
    %13 = arith.addf %11, %12 : vector<1x32xf32>
    %14 = math.rsqrt %13 : vector<1x32xf32>
    %c0_5 = arith.constant 0 : index
    %c0_6 = arith.constant 0 : index
    %15 = vector.load %arg2[%c0_5, %c0_6] : memref<1x32xf32, #tpu.memory_space<vmem>>, vector<1x32xf32>
    %16 = arith.mulf %14, %15 : vector<1x32xf32>
    %c0_7 = arith.constant 0 : index
    %c0_8 = arith.constant 0 : index
    %17 = vector.load %arg3[%c0_7, %c0_8] : memref<1x32xf32, #tpu.memory_space<vmem>>, vector<1x32xf32>
    %18 = arith.mulf %4, %16 : vector<1x32xf32>
    %19 = arith.subf %17, %18 : vector<1x32xf32>
    %20 = vector.broadcast %16 : vector<1x32xf32> to vector<8x32xf32>
    %21 = arith.mulf %0, %20 : vector<8x32xf32>
    %22 = vector.broadcast %19 : vector<1x32xf32> to vector<8x32xf32>
    %23 = arith.addf %21, %22 : vector<8x32xf32>
    %c0_9 = arith.constant 0 : index
    %c0_10 = arith.constant 0 : index
    %24 = vector.load %arg4[%c0_9, %c0_10] : memref<8x32xf32, #tpu.memory_space<vmem>>, vector<8x32xf32>
    tpu.vector_store %arg4[%c0_9, %c0_10], %23 {strides = array<i32>} : memref<8x32xf32, #tpu.memory_space<vmem>>, vector<8x32xf32>,
    return
  }
  func.func @transform_0(%arg0: i32) -> (i32, i32) {
    %c0_i32 = arith.constant 0 : i32
    %c0_i32_0 = arith.constant 0 : i32
    return %c0_i32, %arg0 : i32, i32
  }
  func.func @transform_1(%arg0: i32) -> (i32, i32) {
    %c0_i32 = arith.constant 0 : i32
    %c0_i32_0 = arith.constant 0 : i32
    return %c0_i32, %arg0 : i32, i32
  }
  func.func @transform_2(%arg0: i32) -> (i32, i32) {
    %c0_i32 = arith.constant 0 : i32
    %c0_i32_0 = arith.constant 0 : i32
    return %c0_i32, %arg0 : i32, i32
  }
  func.func @transform_3(%arg0: i32) -> (i32, i32) {
    %c0_i32 = arith.constant 0 : i32
    %c0_i32_0 = arith.constant 0 : i32
    return %c0_i32, %arg0 : i32, i32
  }
}

</mosaic_0001>

<llo_original>
// kernel: tpu_custom_call.1
$region0: #{tpu_custom_call.1}
  #allocation0 [shape = 'u32[]', space=smem, size = 0x4, offset = 0x4, fixed_abs, tag = 'smem constant byte address 0x4 - core index']
  #allocation1 [shape = 'u32[144,128]{1,0:T(1,128)}', space=vmem, size = 0x12000, scoped, tag = 'internal scratch']
  %s0 = inlined_call_operand.hbm [shape: f32[8,32], index: 0, kind: input, shape index: {}]
  %s1 = inlined_call_operand.vmem [shape: f32[1,32], index: 1, kind: input, shape index: {}]
  %s2 = inlined_call_operand.vmem [shape: f32[1,32], index: 2, kind: input, shape index: {}]
  %s3 = inlined_call_operand.hbm [shape: f32[8,32], index: 3, kind: output, shape index: {}]
  %s4 = sld [smem:[#allocation0]]
  $region26: #{tpu_custom_call.1} parent=0
    _
  %s6 = ssub.s32 1, %s4
  %s7 = scalar_select 0, %s6, %s4
  $region1: #{tpu_custom_call.1} parent=0
    #allocation2 [shape = 'u8[4096]{0}', space=vmem, size = 0x1000, scoped, tag = 'input window, operand 0, single buffered']
    #allocation3 [shape = 's32[1]{0}', space=sflag, size = 0x4, scoped, tag = 'scoped memory for tpu_custom_call.1']
    #allocation4 [shape = 's32[1]{0}', space=sflag, size = 0x4, scoped, tag = 'scoped memory for tpu_custom_call.1']
    #allocation5 [shape = 'u8[4096]{0}', space=vmem, size = 0x1000, scoped, tag = 'output window, operand 0, single buffered']
    %8 = vsyncpa [#allocation3], 0
    %9 = vsyncpa [#allocation4], 0
    // Predicated region
    $region2: #{tpu_custom_call.1} parent=1 // pred_check
      _
    $region3: #{tpu_custom_call.1} parent=1 // pred_check_branch
      %11 = sbr.rel (0) target = $region5
    $region4: #{tpu_custom_call.1} parent=1 // pred_region
      %s13 = ssub.s32 128, 128
      %14 = vsyncadd [#allocation3], %s13
      %s16 = sshll.u32 [#allocation2], 4
      %s17 = int_to_ptr.vmem [resolvable:$true] %s16
      %19 = dma.hbm_to_vmem [thread:$0]  %s0, 128, %s17, [#allocation3]
    $region5: #{tpu_custom_call.1} parent=1 // pred_fallthru
      _
    // Predicated region
    $region6: #{tpu_custom_call.1} parent=1 // pred_check
      _
    $region7: #{tpu_custom_call.1} parent=1 // pred_check_branch
      %21 = sbr.rel (0) target = $region9
    $region8: #{tpu_custom_call.1} parent=1 // pred_region
      _
    $region9: #{tpu_custom_call.1} parent=1 // pred_fallthru
      _
    // Predicated region
    $region10: #{tpu_custom_call.1} parent=1 // pred_check
      _
    $region11: #{tpu_custom_call.1} parent=1 // pred_check_branch
      %23 = sbr.rel (0) target = $region13
    $region12: #{tpu_custom_call.1} parent=1 // pred_region
      _
    $region13: #{tpu_custom_call.1} parent=1 // pred_fallthru
      _
    // Predicated region
    $region14: #{tpu_custom_call.1} parent=1 // pred_check
      _
    $region15: #{tpu_custom_call.1} parent=1 // pred_check_branch
      %25 = sbr.rel (0) target = $region17
    $region16: #{tpu_custom_call.1} parent=1 // pred_region
      %26 = dma.done [#allocation3], 128
    $region17: #{tpu_custom_call.1} parent=1 // pred_fallthru
      _
    %v27 = vld [vmem:[#allocation2] sm:$0xff]
    %vm28 = vcmask 261120
    %v29 = vsel %vm28, %v27, 0.0
    %v30 = vrot.slane %v29, 4
    %v31 = vadd.f32 %v29, %v30
    %v32 = vrot.slane %v31, 2
    %v33 = vadd.f32 %v31, %v32
    %v34 = vrot.slane %v33, 1
    %v35 = vadd.f32 %v33, %v34
    %v36 = vmul.f32 %v35, 0.125
    %v37 = vsub.f32 %v27, %v36
    %v38 = vmul.f32 %v37, %v37
    %v39 = vsel %vm28, %v38, 0.0
    %v40 = vrot.slane %v39, 4
    %v41 = vadd.f32 %v39, %v40
    %v42 = vrot.slane %v41, 2
    %v43 = vadd.f32 %v41, %v42
    %v44 = vrot.slane %v43, 1
    %v45 = vadd.f32 %v43, %v44
    %v46 = vmul.f32 %v45, 0.125
    %v47 = vadd.f32 %v46, 1e-05
    %v48 = vrsqrt.pop %v47
    %v49 = vld [vmem:[%s1] sm:$0x1]
    %v50 = vmul.f32 %v48, %v49
    %v51 = vld [vmem:[%s2] sm:$0x1]
    %v52 = vmul.f32 %v36, %v50
    %v53 = vsub.f32 %v51, %v52
    %v54 = vlaneseq
    %v55 = vshrl.u32 %v54, 7
    %v56 = vsub.s32 0, %v55
    %v57 = vrot.slane %v50, %v56
    %v58 = vmul.f32 %v27, %v57
    %v60 = vlaneseq
    %v61 = vshrl.u32 %v60, 7
    %v62 = vsub.s32 0, %v61
    %v63 = vrot.slane %v53, %v62
    %v65 = vadd.f32 %v58, %v63
    %66 = vst.msk [vmem:[#allocation5] sm:$0xff] %vm28, %v65
    // Predicated region
    $region18: #{tpu_custom_call.1} parent=1 // pred_check
      _
    $region19: #{tpu_custom_call.1} parent=1 // pred_check_branch
      %68 = sbr.rel (0) target = $region21
    $region20: #{tpu_custom_call.1} parent=1 // pred_region
      %s70 = ssub.s32 128, 128
      %71 = vsyncadd [#allocation4], %s70
      %s73 = sshll.u32 [#allocation5], 4
      %s74 = int_to_ptr.vmem [resolvable:$true] %s73
      %76 = dma.vmem_to_hbm [thread:$0]  %s74, 128, %s3, [#allocation4]
    $region21: #{tpu_custom_call.1} parent=1 // pred_fallthru
      _
    // Predicated region
    $region22: #{tpu_custom_call.1} parent=1 // pred_check
      _
    $region23: #{tpu_custom_call.1} parent=1 // pred_check_branch
      %78 = sbr.rel (0) target = $region25
    $region24: #{tpu_custom_call.1} parent=1 // pred_region
      %79 = dma.done [#allocation4], 128
    $region25: #{tpu_custom_call.1} parent=1 // pred_fallthru
      _
    %80 = vsyncpa [#allocation3], 1
    %81 = vsyncpa [#allocation4], 1

</llo_original>
